<compile_context>
chip_gen: v7x
topology: tpu7x:2x2x1
jax: 0.10.0
libtpu: 0.0.40
codegen_flags: <defaults>
</compile_context>

<pallas_src>
import math

import jax
import jax.numpy as jnp
from jax.experimental import pallas as pl
from jax.experimental.pallas import tpu as pltpu


_MAX_SEQ_TILE = 512  # 128-512-row tiles sit at ~85% of the HBM roofline for f32 adds


def _round_up(x, m):
    return ((x + m - 1) // m) * m


def _vmem_budgets():
    """(vmem_limit_bytes, per-step block budget) tuned per TPU generation."""
    cap = None
    try:
        cap = getattr(pltpu.get_tpu_info(), "vmem_capacity_bytes", None)
    except Exception:
        cap = None
    if cap is not None and cap >= 100 * 1024 * 1024:
        # v5e / v6e: 128 MiB physical VMEM -> bigger blocks, fewer ~0.35us grid steps.
        return 64 * 1024 * 1024, 24 * 1024 * 1024
    # v7x (64 MiB per TensorCore, both cores' pipelines live in it) or unknown: conservative.
    return 32 * 1024 * 1024, 12 * 1024 * 1024


def _pick_seq_tile(S, row_bytes, block_budget):
    """Sequence rows per grid step (always a multiple of 8).

    Largest 8-aligned tile that fits the double-buffered VMEM budget; when more than one
    tile is needed (or S is big enough to share), the tile count is rounded up to an EVEN
    number of near-equal tiles so v7x's two TensorCores split the grid evenly.
    """
    cap = block_budget // (2 * row_bytes)          # 2x: double-buffered pipeline
    cap = max(8, min(_MAX_SEQ_TILE, (cap // 8) * 8))
    s_pad = _round_up(S, 8)
    if S < 16 and s_pad <= cap:
        return s_pad                               # tiny problem: single tile
    n = max(2, pl.cdiv(s_pad, cap))                # tiles needed to fit the budget
    n = _round_up(n, 2)                            # even tile count -> balanced 2-core split
    return min(_round_up(pl.cdiv(S, n), 8), s_pad)


def make_positional_encoding(d_model, max_len=500, dtype=jnp.float32):
    """Mirror of PositionalEncoding.__init__: pe of shape (max_len, 1, d_model).

    Keep dtype equal to the activations' dtype to get a cast-free native add in the kernel
    (an f32 buffer with bf16 activations falls back to an f32 add inside the kernel).
    """
    position = jnp.arange(0, max_len, dtype=jnp.float32)[:, None]           # (max_len, 1)
    div_term = jnp.exp(
        jnp.arange(0, d_model, 2, dtype=jnp.float32) * (-math.log(10000.0) / d_model)
    )
    pe = jnp.zeros((max_len, d_model), dtype=jnp.float32)
    pe = pe.at[:, 0::2].set(jnp.sin(position * div_term))
    if d_model > 1:
        n_odd = pe[:, 1::2].shape[1]
        pe = pe.at[:, 1::2].set(jnp.cos(position * div_term[:n_odd]))
    return pe[:, None, :].astype(dtype)                                     # (max_len, 1, d_model)


def _add_cast(x, pe, out_dtype):
    if x.dtype == pe.dtype:
        return (x + pe).astype(out_dtype)          # native-dtype add, no casts
    return (x.astype(jnp.float32) + pe.astype(jnp.float32)).astype(out_dtype)


def _add_kernel_batched(x_ref, pe_ref, o_ref):
    # x_ref/o_ref: (ts, B, D); pe_ref: (ts, 1, D) -> sublane broadcast over batch.
    o_ref[...] = _add_cast(x_ref[...], pe_ref[...], o_ref.dtype)


def _make_lane_tiled_kernel(batch):
    def kernel(x_ref, pe_ref, o_ref):
        # x_ref/o_ref: (ts, B*D); pe_ref: (ts, D).  Broadcast pe over batch by
        # concatenating B copies along the lane axis (offsets are 128-aligned because this
        # path is only taken when D % 128 == 0) -- pure in-VMEM compute, no extra HBM traffic.
        pe = pe_ref[...]
        if batch > 1:
            pe = jnp.concatenate([pe] * batch, axis=-1)
        o_ref[...] = _add_cast(x_ref[...], pe, o_ref.dtype)
    return kernel


def _forward_batched(x, pe, *, ts, vmem_limit, in_place):
    """Contiguous (ts, B, D) blocks; pe broadcast over batch (sublanes) in-kernel."""
    S, B, D = x.shape
    return pl.pallas_call(
        _add_kernel_batched,
        out_shape=jax.ShapeDtypeStruct((S, B, D), x.dtype),
        grid=(pl.cdiv(S, ts),),
        in_specs=[
            pl.BlockSpec((ts, B, D), lambda s: (s, 0, 0)),   # ts sequence rows of x
            pl.BlockSpec((ts, 1, D), lambda s: (s, 0, 0)),   # matching rows of the FULL pe
        ],
        out_specs=pl.BlockSpec((ts, B, D), lambda s: (s, 0, 0)),
        input_output_aliases={0: 0} if in_place else {},
        compiler_params=pltpu.CompilerParams(
            dimension_semantics=("parallel",),
            vmem_limit_bytes=vmem_limit,
        ),
    )(x, pe)


def _forward_lane_collapsed(x, pe, *, ts, vmem_limit, in_place):
    """Batch folded into the lane axis: fully dense blocks for B < 8, D % 128 == 0."""
    S, B, D = x.shape
    x2 = x.reshape(S, B * D)              # free bitcast view (row-major contiguous)
    pe2 = pe.reshape(pe.shape[0], D)      # (max_len, D), free bitcast view
    out2 = pl.pallas_call(
        _make_lane_tiled_kernel(B),
        out_shape=jax.ShapeDtypeStruct((S, B * D), x.dtype),
        grid=(pl.cdiv(S, ts),),
        in_specs=[
            pl.BlockSpec((ts, B * D), lambda s: (s, 0)),
            pl.BlockSpec((ts, D), lambda s: (s, 0)),         # small pe rows only (S*D traffic)
        ],
        out_specs=pl.BlockSpec((ts, B * D), lambda s: (s, 0)),
        input_output_aliases={0: 0} if in_place else {},
        compiler_params=pltpu.CompilerParams(
            dimension_semantics=("parallel",),
            vmem_limit_bytes=vmem_limit,
        ),
    )(x2, pe2)
    return out2.reshape(S, B, D)


def positional_encoding_forward(x, pe, *, in_place=False, seq_tile=None):
    """x: (S, B, D); pe: (max_len, 1, D).  Returns x + pe[:S] broadcast over batch.

    in_place=True adds input_output_aliases={0: 0}; this only avoids the extra (S, B, D)
    HBM buffer if the caller donates x (e.g. jax.jit(..., donate_argnums=0)).  In the
    lane-collapsed path the alias is through a free reshape (bitcast) of the donated buffer.
    seq_tile overrides the automatic sequence-tile choice (testing / tuning).
    """
    S, B, D = x.shape
    max_len = pe.shape[0]
    if S > max_len:
        raise ValueError(f"seq_len {S} exceeds positional-encoding max_len {max_len}")
    if pe.shape != (max_len, 1, D):
        raise ValueError(f"pe shape {pe.shape} incompatible with x shape {x.shape}")

    vmem_limit, block_budget = _vmem_budgets()
    x_item = jnp.dtype(x.dtype).itemsize
    pe_item = jnp.dtype(pe.dtype).itemsize
    d_pad = _round_up(D, 128)

    use_lane_collapsed = (B < 8) and (D % 128 == 0)

    if use_lane_collapsed:
        # Fully dense blocks; pe broadcast in-kernel (no x-sized pe anywhere).
        row_bytes = 2 * _round_up(B * D, 128) * x_item + d_pad * pe_item
        ts = seq_tile if seq_tile is not None else _pick_seq_tile(S, row_bytes, block_budget)
        ts = min(_round_up(int(ts), 8), _round_up(S, 8))
        return _forward_lane_collapsed(x, pe, ts=ts, vmem_limit=vmem_limit, in_place=in_place)

    # Contiguous 3-D blocks.  Dense when B % 8 == 0; otherwise the batch dim pads to the
    # next multiple of 8 sublanes (see module TODO) but HBM access stays streaming.
    row_bytes = 2 * _round_up(B, 8) * d_pad * x_item + 8 * d_pad * pe_item
    ts = seq_tile if seq_tile is not None else _pick_seq_tile(S, row_bytes, block_budget)
    ts = min(_round_up(int(ts), 8), _round_up(S, 8))
    return _forward_batched(x, pe, ts=ts, vmem_limit=vmem_limit, in_place=in_place)


if __name__ == "__main__":
    key = jax.random.PRNGKey(0)
    k1, k2, k3 = jax.random.split(key, 3)
    max_len = 500

    # Case 1: toy config from the reference script (small d_model, tiny batch).
    # D=32 is not lane-dense, so this takes the contiguous batched 3-D path.
    d1, s1, b1 = 32, 8, 2
    pe1 = make_positional_encoding(d1, max_len=max_len)
    x1 = jax.random.normal(k1, (s1, b1, d1), dtype=jnp.float32)
    o1 = jax.block_until_ready(positional_encoding_forward(x1, pe1))
    assert o1.shape == (s1, b1, d1)
    assert jnp.allclose(o1, x1 + pe1[:s1], atol=1e-6, rtol=1e-6)

    # Case 2: lane-dense d_model with tiny batch -> lane-collapsed path (in-kernel pe
    # broadcast via aligned lane concat), multi-tile grid, native bf16 add (no f32 trip).
    d2, s2, b2 = 128, 16, 2
    pe2 = make_positional_encoding(d2, max_len=max_len, dtype=jnp.bfloat16)
    x2 = jax.random.normal(k2, (s2, b2, d2), dtype=jnp.bfloat16)
    o2 = jax.block_until_ready(positional_encoding_forward(x2, pe2))
    ref2 = x2 + pe2[:s2]
    assert o2.shape == (s2, b2, d2)
    assert jnp.allclose(o2.astype(jnp.float32), ref2.astype(jnp.float32), atol=5e-2, rtol=5e-2)

    # Case 3: batch multiple of 8 (dense batched path) with a forced small tile so the
    # grid has a ragged last block (S=20, ts=8 -> blocks 8,8,4): exercises pe reads past S
    # (< max_len) and masked writeback of the partial output block.
    d3, s3, b3 = 128, 20, 8
    pe3 = make_positional_encoding(d3, max_len=max_len)
    x3 = jax.random.normal(k3, (s3, b3, d3), dtype=jnp.float32)
    o3 = jax.block_until_ready(positional_encoding_forward(x3, pe3, seq_tile=8))
    assert o3.shape == (s3, b3, d3)
    assert jnp.allclose(o3, x3 + pe3[:s3], atol=1e-6, rtol=1e-6)

    print("KERNEL_OK")
</pallas_src>

<mosaic_0001>
module attributes {stable_mosaic.version = 11 : i64} {
  func.func @_add_kernel_batched(%arg0: i32, %arg1: memref<8x2x32xf32, #tpu.memory_space<vmem>>, %arg2: memref<8x1x32xf32, #tpu.memory_space<vmem>>, %arg3: memref<8x2x32xf32, #tpu.memory_space<vmem>>) attributes {dimension_semantics = [#tpu.dimension_semantics<parallel>], iteration_bounds = array<i64: 1>, scalar_prefetch = 0 : i64, scratch_operands = 0 : i64, tpu.core_type = #tpu.core_type<tc>, window_params = [{transform_indices = @transform_0, window_bounds = array<i64: 8, 2, 32>}, {transform_indices = @transform_1, window_bounds = array<i64: 8, 1, 32>}, {transform_indices = @transform_2, window_bounds = array<i64: 8, 2, 32>}]} {
    %c0 = arith.constant 0 : index
    %c0_0 = arith.constant 0 : index
    %c0_1 = arith.constant 0 : index
    %0 = vector.load %arg1[%c0, %c0_0, %c0_1] : memref<8x2x32xf32, #tpu.memory_space<vmem>>, vector<8x2x32xf32>
    %c0_2 = arith.constant 0 : index
    %c0_3 = arith.constant 0 : index
    %c0_4 = arith.constant 0 : index
    %1 = vector.load %arg2[%c0_2, %c0_3, %c0_4] : memref<8x1x32xf32, #tpu.memory_space<vmem>>, vector<8x1x32xf32>
    %2 = vector.broadcast %1 : vector<8x1x32xf32> to vector<8x2x32xf32>
    %3 = arith.addf %0, %2 : vector<8x2x32xf32>
    %c0_5 = arith.constant 0 : index
    %c0_6 = arith.constant 0 : index
    %c0_7 = arith.constant 0 : index
    %4 = vector.load %arg3[%c0_5, %c0_6, %c0_7] : memref<8x2x32xf32, #tpu.memory_space<vmem>>, vector<8x2x32xf32>
    tpu.vector_store %arg3[%c0_5, %c0_6, %c0_7], %3 {strides = array<i32>} : memref<8x2x32xf32, #tpu.memory_space<vmem>>, vector<8x2x32xf32>,
    return
  }
  func.func @transform_0(%arg0: i32) -> (i32, i32, i32) {
    %c0_i32 = arith.constant 0 : i32
    %c0_i32_0 = arith.constant 0 : i32
    %c0_i32_1 = arith.constant 0 : i32
    return %arg0, %c0_i32, %c0_i32_0 : i32, i32, i32
  }
  func.func @transform_1(%arg0: i32) -> (i32, i32, i32) {
    %c0_i32 = arith.constant 0 : i32
    %c0_i32_0 = arith.constant 0 : i32
    %c0_i32_1 = arith.constant 0 : i32
    return %arg0, %c0_i32, %c0_i32_0 : i32, i32, i32
  }
  func.func @transform_2(%arg0: i32) -> (i32, i32, i32) {
    %c0_i32 = arith.constant 0 : i32
    %c0_i32_0 = arith.constant 0 : i32
    %c0_i32_1 = arith.constant 0 : i32
    return %arg0, %c0_i32, %c0_i32_0 : i32, i32, i32
  }
}

</mosaic_0001>

<llo_original>
// kernel: tpu_custom_call.1
$region0: #{tpu_custom_call.1}
  #allocation0 [shape = 'u32[]', space=smem, size = 0x4, offset = 0x4, fixed_abs, tag = 'smem constant byte address 0x4 - core index']
  #allocation1 [shape = 'u32[144,128]{1,0:T(1,128)}', space=vmem, size = 0x12000, scoped, tag = 'internal scratch']
  %s0 = inlined_call_operand.vmem [shape: f32[8,2,32], index: 0, kind: input, shape index: {}]
  %s1 = inlined_call_operand.vmem [shape: f32[500,1,32], index: 1, kind: input, shape index: {}]
  %s2 = inlined_call_operand.hbm [shape: f32[8,2,32], index: 2, kind: output, shape index: {}]
  %s3 = sld [smem:[#allocation0]]
  $region18: #{tpu_custom_call.1} parent=0
    _
  %s5 = ssub.s32 1, %s3
  %s6 = scalar_select 0, %s5, %s3
  $region1: #{tpu_custom_call.1} parent=0
    #allocation2 [shape = 'u8[8192]{0}', space=vmem, size = 0x2000, scoped, tag = 'output window, operand 0, single buffered']
    #allocation3 [shape = 's32[1]{0}', space=sflag, size = 0x4, scoped, tag = 'scoped memory for tpu_custom_call.1']
    %7 = vsyncpa [#allocation3], 0
    // Predicated region
    $region2: #{tpu_custom_call.1} parent=1 // pred_check
      _
    $region3: #{tpu_custom_call.1} parent=1 // pred_check_branch
      %9 = sbr.rel (0) target = $region5
    $region4: #{tpu_custom_call.1} parent=1 // pred_region
      _
    $region5: #{tpu_custom_call.1} parent=1 // pred_fallthru
      _
    // Predicated region
    $region6: #{tpu_custom_call.1} parent=1 // pred_check
      _
    $region7: #{tpu_custom_call.1} parent=1 // pred_check_branch
      %11 = sbr.rel (0) target = $region9
    $region8: #{tpu_custom_call.1} parent=1 // pred_region
      _
    $region9: #{tpu_custom_call.1} parent=1 // pred_fallthru
      _
    %v12 = vld [vmem:[%s0] sm:$0x3]
    %v13 = vld [vmem:[%s0 + $0x2] sm:$0x3]
    %v14 = vld [vmem:[%s0 + $0x4] sm:$0x3]
    %v15 = vld [vmem:[%s0 + $0x6] sm:$0x3]
    %v16 = vld [vmem:[%s0 + $0x8] sm:$0x3]
    %v17 = vld [vmem:[%s0 + $0xa] sm:$0x3]
    %v18 = vld [vmem:[%s0 + $0xc] sm:$0x3]
    %v19 = vld [vmem:[%s0 + $0xe] sm:$0x3]
    %v20 = vld [vmem:[%s1] sm:$0x1]
    %v21 = vld [vmem:[%s1 + $0x1] sm:$0x1]
    %v22 = vld [vmem:[%s1 + $0x2] sm:$0x1]
    %v23 = vld [vmem:[%s1 + $0x3] sm:$0x1]
    %v24 = vld [vmem:[%s1 + $0x4] sm:$0x1]
    %v25 = vld [vmem:[%s1 + $0x5] sm:$0x1]
    %v26 = vld [vmem:[%s1 + $0x6] sm:$0x1]
    %v27 = vld [vmem:[%s1 + $0x7] sm:$0x1]
    %v36 = vlaneseq
    %v37 = vshrl.u32 %v36, 7
    %v38 = vsub.s32 0, %v37
    %v39 = vrot.slane %v20, %v38
    %v40 = vlaneseq
    %v41 = vshrl.u32 %v40, 7
    %v42 = vsub.s32 0, %v41
    %v43 = vrot.slane %v21, %v42
    %v44 = vlaneseq
    %v45 = vshrl.u32 %v44, 7
    %v46 = vsub.s32 0, %v45
    %v47 = vrot.slane %v22, %v46
    %v48 = vlaneseq
    %v49 = vshrl.u32 %v48, 7
    %v50 = vsub.s32 0, %v49
    %v51 = vrot.slane %v23, %v50
    %v52 = vlaneseq
    %v53 = vshrl.u32 %v52, 7
    %v54 = vsub.s32 0, %v53
    %v55 = vrot.slane %v24, %v54
    %v56 = vlaneseq
    %v57 = vshrl.u32 %v56, 7
    %v58 = vsub.s32 0, %v57
    %v59 = vrot.slane %v25, %v58
    %v60 = vlaneseq
    %v61 = vshrl.u32 %v60, 7
    %v62 = vsub.s32 0, %v61
    %v63 = vrot.slane %v26, %v62
    %v64 = vlaneseq
    %v65 = vshrl.u32 %v64, 7
    %v66 = vsub.s32 0, %v65
    %v67 = vrot.slane %v27, %v66
    %v76 = vadd.f32 %v12, %v39
    %v77 = vadd.f32 %v13, %v43
    %v78 = vadd.f32 %v14, %v47
    %v79 = vadd.f32 %v15, %v51
    %v80 = vadd.f32 %v16, %v55
    %v81 = vadd.f32 %v17, %v59
    %v82 = vadd.f32 %v18, %v63
    %v83 = vadd.f32 %v19, %v67
    %vm84 = vcmask 254976
    %85 = vst.msk [vmem:[#allocation2] sm:$0x3] %vm84, %v76
    %86 = vst.msk [vmem:[#allocation2 + $0x2] sm:$0x3] %vm84, %v77
    %87 = vst.msk [vmem:[#allocation2 + $0x4] sm:$0x3] %vm84, %v78
    %88 = vst.msk [vmem:[#allocation2 + $0x6] sm:$0x3] %vm84, %v79
    %89 = vst.msk [vmem:[#allocation2 + $0x8] sm:$0x3] %vm84, %v80
    %90 = vst.msk [vmem:[#allocation2 + $0xa] sm:$0x3] %vm84, %v81
    %91 = vst.msk [vmem:[#allocation2 + $0xc] sm:$0x3] %vm84, %v82
    %92 = vst.msk [vmem:[#allocation2 + $0xe] sm:$0x3] %vm84, %v83
    // Predicated region
    $region10: #{tpu_custom_call.1} parent=1 // pred_check
      _
    $region11: #{tpu_custom_call.1} parent=1 // pred_check_branch
      %94 = sbr.rel (0) target = $region13
    $region12: #{tpu_custom_call.1} parent=1 // pred_region
      %s96 = ssub.s32 256, 256
      %97 = vsyncadd [#allocation3], %s96
      %s98 = sshll.u32 [#allocation2], 4
      %s99 = int_to_ptr.vmem [resolvable:$true] %s98
      %104 = dma.vmem_to_hbm [thread:$0]  %s99, 256, %s2, [#allocation3], 32, 32, 2
    $region13: #{tpu_custom_call.1} parent=1 // pred_fallthru
      _
    // Predicated region
    $region14: #{tpu_custom_call.1} parent=1 // pred_check
      _
    $region15: #{tpu_custom_call.1} parent=1 // pred_check_branch
      %106 = sbr.rel (0) target = $region17
    $region16: #{tpu_custom_call.1} parent=1 // pred_region
      %107 = dma.done [#allocation3], 256
    $region17: #{tpu_custom_call.1} parent=1 // pred_fallthru
      _
    %108 = vsyncpa [#allocation3], 1

</llo_original>
